<compile_context>
chip_gen: v7x
topology: tpu7x:2x2x1
jax: 0.10.0
libtpu: 0.0.40
codegen_flags: <defaults>
</compile_context>

<pallas_src>
from typing import List

import jax
import jax.numpy as jnp
from jax.experimental import pallas as pl
from jax.experimental.pallas import tpu as pltpu


# ----------------------------- Pallas kernel ---------------------------------
def _conv1x1_kernel(x_ref, w_ref, b_ref, o_ref):
    # x_ref: VMEM (Cin, TP)   w_ref: SMEM (Cout, Cin)   b_ref: SMEM (Cout,)
    # o_ref: VMEM (Cout, TP)
    cout, cin = w_ref.shape
    x = x_ref[...].astype(jnp.float32)                       # (Cin, TP)
    for o in range(cout):                                    # tiny, fully unrolled
        acc = x[0:1, :] * w_ref[o, 0]                        # VPU scalar-splat FMA chain
        for c in range(1, cin):
            acc = acc + x[c:c + 1, :] * w_ref[o, c]
        o_ref[o:o + 1, :] = (acc + b_ref[o]).astype(o_ref.dtype)


def conv1x1_nchw(x_nchw: jax.Array, weight: jax.Array, bias: jax.Array,
                 *, tp: int = 2048) -> jax.Array:
    """1x1 Conv2d, stride 1, matching torch.nn.Conv2d(Cin, Cout, kernel_size=1).

    x_nchw : (B, Cin, H, W)
    weight : (Cout, Cin)        (torch weight (Cout, Cin, 1, 1) squeezed)
    bias   : (Cout,)
    returns: (B, Cout, H, W)
    """
    B, Cin, H, W = x_nchw.shape
    Cout = weight.shape[0]
    HW = H * W

    # channel-major view: (B, Cin, H*W) -- contiguous merge, no data movement
    x3 = x_nchw.reshape(B, Cin, HW)

    # pixel tile: multiple of 128, capped at the (rounded-up) problem size and `tp`
    hw_pad = ((HW + 127) // 128) * 128
    tp_eff = max(128, (min(tp, hw_pad) // 128) * 128)
    grid_p = (HW + tp_eff - 1) // tp_eff
    if B * grid_p < 2 and tp_eff > 128:
        # v7x has 2 TensorCores: prefer >=2 grid steps over the maximum tile size
        tp_eff = max(128, ((hw_pad // 2 + 127) // 128) * 128)
        grid_p = (HW + tp_eff - 1) // tp_eff

    out3 = pl.pallas_call(
        _conv1x1_kernel,
        out_shape=jax.ShapeDtypeStruct((B, Cout, HW), x_nchw.dtype),
        grid=(B, grid_p),
        in_specs=[
            pl.BlockSpec((None, Cin, tp_eff), lambda b, p: (b, 0, p)),    # pixels on lanes
            pl.BlockSpec(memory_space=pltpu.MemorySpace.SMEM),            # weight scalars
            pl.BlockSpec(memory_space=pltpu.MemorySpace.SMEM),            # bias scalars
        ],
        out_specs=pl.BlockSpec((None, Cout, tp_eff), lambda b, p: (b, 0, p)),
        compiler_params=pltpu.CompilerParams(
            dimension_semantics=("parallel", "parallel")),
    )(x3, weight, bias)

    # (B, Cout, H*W) -> (B, Cout, H, W): free reshape, no transpose
    return out3.reshape(B, Cout, H, W)


# ----------------------------- Module wrappers --------------------------------
class OutLayer:
    """deep_supervision == 0 branch of OutLayer: a single 1x1 conv on y0."""

    def __init__(self, in_channels: List[int], out_channel: int = 1,
                 deep_supervision: int = 0, key=None):
        assert deep_supervision == 0, "only deep_supervision=0 (module default) is implemented"
        self.deep_supervision = deep_supervision
        self.in_channels = in_channels
        self.out_channel = out_channel
        if key is None:
            key = jax.random.PRNGKey(42)
        kw, kb = jax.random.split(key)
        cin = in_channels[0]
        # deterministic init mimicking torch Conv2d default (uniform in +-1/sqrt(cin))
        bound = 1.0 / jnp.sqrt(jnp.float32(cin))
        self.weight = jax.random.uniform(kw, (out_channel, cin), jnp.float32,
                                         -bound, bound)
        self.bias = jax.random.uniform(kb, (out_channel,), jnp.float32,
                                       -bound, bound)

    def __call__(self, y: List[jax.Array]) -> List[jax.Array]:
        y3, y2, y1, y0 = y
        return [conv1x1_nchw(y0, self.weight, self.bias)]


class MTTGnrtHead:
    """Inference forward of MTTGnrtHead (training loss path not translated)."""

    def __init__(self, loss_function, in_channels: List[int], out_channel: int = 1,
                 is_drop: bool = False, deep_supervision: int = 0,
                 interloss_weight=(0.125, 0.125, 0.125, 0.5)):
        assert deep_supervision <= 3
        self.is_drop = is_drop
        self.loss_function = loss_function
        self.deep_supervision = deep_supervision
        self.interloss_weight = list(interloss_weight)
        self.outlayer = OutLayer(in_channels, out_channel, deep_supervision)
        # TODO(synk): training-mode path (dropout, external loss_function,
        # bicubic/nearest interpolate, deep_supervision 1/2/3) not translated.

    def __call__(self, features: List[jax.Array], targets=None):
        logits = self.outlayer(features)
        return logits


# ----------------------------------- main -------------------------------------
if __name__ == "__main__":
    key = jax.random.PRNGKey(0)
    k3, k2, k1, k0 = jax.random.split(key, 4)

    B = 2
    in_channels = [4, 8, 16, 32]   # [c(y0), c(y1), c(y2), c(y3)]
    out_channel = 1
    H = W = 16

    # feature pyramid [y3, y2, y1, y0] (coarse -> fine), NCHW
    y3 = jax.random.normal(k3, (B, in_channels[3], H // 8, W // 8), jnp.float32)
    y2 = jax.random.normal(k2, (B, in_channels[2], H // 4, W // 4), jnp.float32)
    y1 = jax.random.normal(k1, (B, in_channels[1], H // 2, W // 2), jnp.float32)
    y0 = jax.random.normal(k0, (B, in_channels[0], H, W), jnp.float32)
    features = [y3, y2, y1, y0]

    head = MTTGnrtHead(loss_function=None, in_channels=in_channels,
                       out_channel=out_channel, deep_supervision=0)

    logits = head(features)
    logit = jax.block_until_ready(logits[0])
    assert logit.shape == (B, out_channel, H, W), logit.shape

    # cross-check against a plain-JAX reference of the 1x1 conv
    ref = jnp.einsum("bchw,oc->bohw", y0, head.outlayer.weight) \
        + head.outlayer.bias.reshape(1, -1, 1, 1)
    assert jnp.allclose(logit, ref, atol=1e-5, rtol=1e-5), \
        float(jnp.max(jnp.abs(logit - ref)))

    print("KERNEL_OK")
</pallas_src>

<mosaic_0001>
module attributes {stable_mosaic.version = 11 : i64} {
  func.func @_conv1x1_kernel(%arg0: i32, %arg1: i32, %arg2: memref<1x4x256xf32, #tpu.memory_space<vmem>>, %arg3: memref<1x4xf32, #tpu.memory_space<smem>>, %arg4: memref<1xf32, #tpu.memory_space<smem>>, %arg5: memref<1x1x256xf32, #tpu.memory_space<vmem>>) attributes {dimension_semantics = [#tpu.dimension_semantics<parallel>, #tpu.dimension_semantics<parallel>], iteration_bounds = array<i64: 2, 1>, scalar_prefetch = 0 : i64, scratch_operands = 0 : i64, tpu.core_type = #tpu.core_type<tc>, window_params = [{transform_indices = @transform_0, window_bounds = array<i64: 1, 4, 256>}, {transform_indices = @transform_1, window_bounds = array<i64: 1, 4>}, {transform_indices = @transform_2, window_bounds = array<i64: 1>}, {transform_indices = @transform_3, window_bounds = array<i64: 1, 1, 256>}]} {
    %c0 = arith.constant 0 : index
    %c0_0 = arith.constant 0 : index
    %c0_1 = arith.constant 0 : index
    %0 = vector.load %arg2[%c0, %c0_0, %c0_1] : memref<1x4x256xf32, #tpu.memory_space<vmem>>, vector<1x4x256xf32>
    %1 = vector.shape_cast %0 : vector<1x4x256xf32> to vector<4x256xf32>
    %2 = vector.extract_strided_slice %1 {offsets = [0, 0], sizes = [1, 256], strides = [1, 1]} : vector<4x256xf32> to vector<1x256xf32>
    %c0_2 = arith.constant 0 : index
    %c0_3 = arith.constant 0 : index
    %3 = memref.load %arg3[%c0_2, %c0_3] : memref<1x4xf32, #tpu.memory_space<smem>>
    %4 = vector.broadcast %3 : f32 to vector<1x256xf32>
    %5 = arith.mulf %2, %4 : vector<1x256xf32>
    %6 = vector.extract_strided_slice %1 {offsets = [1, 0], sizes = [1, 256], strides = [1, 1]} : vector<4x256xf32> to vector<1x256xf32>
    %c0_4 = arith.constant 0 : index
    %c1 = arith.constant 1 : index
    %7 = memref.load %arg3[%c0_4, %c1] : memref<1x4xf32, #tpu.memory_space<smem>>
    %8 = vector.broadcast %7 : f32 to vector<1x256xf32>
    %9 = arith.mulf %6, %8 : vector<1x256xf32>
    %10 = arith.addf %5, %9 : vector<1x256xf32>
    %11 = vector.extract_strided_slice %1 {offsets = [2, 0], sizes = [1, 256], strides = [1, 1]} : vector<4x256xf32> to vector<1x256xf32>
    %c0_5 = arith.constant 0 : index
    %c2 = arith.constant 2 : index
    %12 = memref.load %arg3[%c0_5, %c2] : memref<1x4xf32, #tpu.memory_space<smem>>
    %13 = vector.broadcast %12 : f32 to vector<1x256xf32>
    %14 = arith.mulf %11, %13 : vector<1x256xf32>
    %15 = arith.addf %10, %14 : vector<1x256xf32>
    %16 = vector.extract_strided_slice %1 {offsets = [3, 0], sizes = [1, 256], strides = [1, 1]} : vector<4x256xf32> to vector<1x256xf32>
    %c0_6 = arith.constant 0 : index
    %c3 = arith.constant 3 : index
    %17 = memref.load %arg3[%c0_6, %c3] : memref<1x4xf32, #tpu.memory_space<smem>>
    %18 = vector.broadcast %17 : f32 to vector<1x256xf32>
    %19 = arith.mulf %16, %18 : vector<1x256xf32>
    %20 = arith.addf %15, %19 : vector<1x256xf32>
    %c0_7 = arith.constant 0 : index
    %21 = memref.load %arg4[%c0_7] : memref<1xf32, #tpu.memory_space<smem>>
    %22 = vector.broadcast %21 : f32 to vector<1x256xf32>
    %23 = arith.addf %20, %22 : vector<1x256xf32>
    %c0_8 = arith.constant 0 : index
    %c0_9 = arith.constant 0 : index
    %c0_10 = arith.constant 0 : index
    %24 = vector.load %arg5[%c0_8, %c0_9, %c0_10] : memref<1x1x256xf32, #tpu.memory_space<vmem>>, vector<1x1x256xf32>
    %25 = vector.shape_cast %24 : vector<1x1x256xf32> to vector<1x256xf32>
    %26 = vector.shape_cast %23 : vector<1x256xf32> to vector<1x1x256xf32>
    tpu.vector_store %arg5[%c0_8, %c0_9, %c0_10], %26 {strides = array<i32>} : memref<1x1x256xf32, #tpu.memory_space<vmem>>, vector<1x1x256xf32>,
    return
  }
  func.func @transform_0(%arg0: i32, %arg1: i32) -> (i32, i32, i32) {
    %c0_i32 = arith.constant 0 : i32
    %c0_i32_0 = arith.constant 0 : i32
    return %arg0, %c0_i32, %arg1 : i32, i32, i32
  }
  func.func @transform_1(%arg0: i32, %arg1: i32) -> (i32, i32) {
    %c0_i32 = arith.constant 0 : i32
    %c0_i32_0 = arith.constant 0 : i32
    %c0_i32_1 = arith.constant 0 : i32
    return %c0_i32, %c0_i32_0 : i32, i32
  }
  func.func @transform_2(%arg0: i32, %arg1: i32) -> i32 {
    %c0_i32 = arith.constant 0 : i32
    %c0_i32_0 = arith.constant 0 : i32
    return %c0_i32 : i32
  }
  func.func @transform_3(%arg0: i32, %arg1: i32) -> (i32, i32, i32) {
    %c0_i32 = arith.constant 0 : i32
    %c0_i32_0 = arith.constant 0 : i32
    return %arg0, %c0_i32, %arg1 : i32, i32, i32
  }
}

</mosaic_0001>

<llo_original>
// kernel: tpu_custom_call.1
$region0: #{tpu_custom_call.1}
  #allocation0 [shape = 'u32[]', space=smem, size = 0x4, offset = 0x4, fixed_abs, tag = 'smem constant byte address 0x4 - core index']
  #allocation1 [shape = 'u32[144,128]{1,0:T(1,128)}', space=vmem, size = 0x12000, scoped, tag = 'internal scratch']
  #allocation2 [shape = 'f32[1]{0:T(128)S(6)}', space=smem, size = 0x200, scoped, tag = 'scoped memory for tpu_custom_call.1']
  %s0 = inlined_call_operand.hbm [shape: f32[2,4,256], index: 0, kind: input, shape index: {}]
  %s1 = inlined_call_operand.vmem [shape: f32[1,4], index: 1, kind: input, shape index: {}]
  %s2 = inlined_call_operand.<no memory space> [shape: f32[1], index: 2, kind: input, shape index: {}]
  %s3 = inlined_call_operand.hbm [shape: f32[2,1,256], index: 3, kind: output, shape index: {}]
  %s4 = sld [smem:[#allocation0]]
  $region53: #{tpu_custom_call.1} parent=0
    _
  %s6 = ssub.s32 1, %s4
  %s7 = scalar_select 0, %s6, %s4
  %8 = sst [smem:[#allocation2]] %s2
  $region1: #{tpu_custom_call.1} parent=0
    #allocation3 [shape = 'u8[8192]{0}', space=vmem, size = 0x2000, scoped, tag = 'input window, operand 0']
    #allocation4 [shape = 's32[2]{0}', space=sflag, size = 0x8, scoped, tag = 'scoped memory for tpu_custom_call.1']
    #allocation5 [shape = 's32[2]{0}', space=sflag, size = 0x8, scoped, tag = 'scoped memory for tpu_custom_call.1']
    #allocation6 [shape = 's32[2]{0}', space=sflag, size = 0x8, scoped, tag = 'scoped memory for tpu_custom_call.1']
    #allocation7 [shape = 'u8[512]{0}', space=smem, size = 0x200, scoped, tag = 'input window, operand 1, single buffered']
    #allocation8 [shape = 'u8[2048]{0}', space=vmem, size = 0x800, scoped, tag = 'output window, operand 0']
    %9 = vsyncpa [#allocation4], 0
    %s10 = scalar_lea.sflag [#allocation4], 1
    %11 = vsyncpa %s10, 0
    %12 = vsyncpa [#allocation6], 0
    %13 = vsyncpa [#allocation5], 0
    %s14 = scalar_lea.sflag [#allocation5], 1
    %15 = vsyncpa %s14, 0
    loop: start=0, step=1, limit=4
    $region2: #{tpu_custom_call.1} parent=1 // loop_pre_header
      _
    $region3: #{tpu_custom_call.1} parent=1 // loop_header
      %s17 = sphi 0, %s21
      %p18 = scmp.ge.s32.totalorder %s17, 4
      %s24 = sphi 0, %s36
      %s25 = sphi 0, %s32
      %s26 = sphi 0, %s24
      %s27 = sphi 0, %s25
      %s28 = sphi 0, %s26
      %s29 = sphi 0, %s27
      %s41 = sphi 0, %s43
      %s44 = sphi 0, %s41
      %s45 = sphi 0, %s44
      %s61 = sphi 0, %s45
      %s65 = sphi 0, %s65
      %s67 = sphi 0, %s65
      %s68 = sphi 0, %s67
      %s82 = sphi 0, %s68
      %s86 = sphi 0, %s86
      %s88 = sphi 0, %s86
      %s89 = sphi 0, %s88
      %s103 = sphi 0, %s89
      %s111 = sphi 0, %s113
      %s114 = sphi 0, %s111
      %s115 = sphi 0, %s114
      %s131 = sphi 0, %s115
    $region4: #{tpu_custom_call.1} parent=1 // loop_header_branch
      %20 = sbr.rel (%p18) target = $region8
    $region5: #{tpu_custom_call.1} parent=1 // loop_body
      %s22 = ssub.s32 %s17, 1
      %s23 = ssub.s32 %s17, 2
      %s30 = sadd.s32 1, %s25
      %p31 = scmp.ge.s32.totalorder %s30, 1
      %s32 = scalar_select %p31, 0, %s30
      %s33 = sadd.s32 1, %s24
      %s34 = scalar_select %p31, %s33, %s24
      %p35 = scmp.ge.s32.totalorder %s34, 2
      %s36 = scalar_select %p35, 0, %s34
      %s37 = ssub.s32 %s24, %s36
      %s38 = ssub.s32 %s25, %s32
      %s39 = sor.u32 %s37, %s38
      %p40 = scmp.eq.s32.totalorder %s39, 0
      %s42 = sadd.s32 %s41, 1
      %s43 = scalar_select %p40, %s41, %s42
      %p46 = pneg %p40
      %p47 = scmp.eq.s32.totalorder %s17, 1
      %p48 = por %p46, %p47
      %p49 = scmp.ne.s32.totalorder %s41, %s44
      %p50 = scmp.eq.s32.totalorder %s17, 0
      %p51 = por %p49, %p50
      %p52 = scmp.ne.s32.totalorder %s41, %s44
      %p53 = scmp.eq.s32.totalorder %s22, 1
      %p54 = por %p52, %p53
      %p55 = scmp.ne.s32.totalorder %s44, %s45
      %p56 = scmp.eq.s32.totalorder %s22, 0
      %p57 = por %p55, %p56
      %p58 = scmp.ne.s32.totalorder %s44, %s45
      %p59 = scmp.eq.s32.totalorder %s23, 1
      %p60 = por %p58, %p59
      %p62 = scmp.ne.s32.totalorder %s45, %s61
      %p63 = scmp.eq.s32.totalorder %s23, 0
      %p64 = por %p62, %p63
      %s66 = sadd.s32 %s65, 1
      %p69 = scmp.eq.s32.totalorder %s17, 1
      %p70 = scmp.ne.s32.totalorder %s65, %s67
      %p71 = scmp.eq.s32.totalorder %s17, 0
      %p72 = por %p70, %p71
      %p73 = scmp.ne.s32.totalorder %s65, %s67
      %p74 = scmp.eq.s32.totalorder %s22, 1
      %p75 = por %p73, %p74
      %p76 = scmp.ne.s32.totalorder %s67, %s68
      %p77 = scmp.eq.s32.totalorder %s22, 0
      %p78 = por %p76, %p77
      %p79 = scmp.ne.s32.totalorder %s67, %s68
      %p80 = scmp.eq.s32.totalorder %s23, 1
      %p81 = por %p79, %p80
      %p83 = scmp.ne.s32.totalorder %s68, %s82
      %p84 = scmp.eq.s32.totalorder %s23, 0
      %p85 = por %p83, %p84
      %s87 = sadd.s32 %s86, 1
      %p90 = scmp.eq.s32.totalorder %s17, 1
      %p91 = scmp.ne.s32.totalorder %s86, %s88
      %p92 = scmp.eq.s32.totalorder %s17, 0
      %p93 = por %p91, %p92
      %p94 = scmp.ne.s32.totalorder %s86, %s88
      %p95 = scmp.eq.s32.totalorder %s22, 1
      %p96 = por %p94, %p95
      %p97 = scmp.ne.s32.totalorder %s88, %s89
      %p98 = scmp.eq.s32.totalorder %s22, 0
      %p99 = por %p97, %p98
      %p100 = scmp.ne.s32.totalorder %s88, %s89
      %p101 = scmp.eq.s32.totalorder %s23, 1
      %p102 = por %p100, %p101
      %p104 = scmp.ne.s32.totalorder %s89, %s103
      %p105 = scmp.eq.s32.totalorder %s23, 0
      %p106 = por %p104, %p105
      %s107 = ssub.s32 %s24, %s36
      %s108 = ssub.s32 %s25, %s32
      %s109 = sor.u32 %s107, %s108
      %p110 = scmp.eq.s32.totalorder %s109, 0
      %s112 = sadd.s32 %s111, 1
      %s113 = scalar_select %p110, %s111, %s112
      %p116 = pneg %p110
      %p117 = scmp.eq.s32.totalorder %s17, 1
      %p118 = por %p116, %p117
      %p119 = scmp.ne.s32.totalorder %s111, %s114
      %p120 = scmp.eq.s32.totalorder %s17, 0
      %p121 = por %p119, %p120
      %p122 = scmp.ne.s32.totalorder %s111, %s114
      %p123 = scmp.eq.s32.totalorder %s22, 1
      %p124 = por %p122, %p123
      %p125 = scmp.ne.s32.totalorder %s114, %s115
      %p126 = scmp.eq.s32.totalorder %s22, 0
      %p127 = por %p125, %p126
      %p128 = scmp.ne.s32.totalorder %s114, %s115
      %p129 = scmp.eq.s32.totalorder %s23, 1
      %p130 = por %p128, %p129
      %p132 = scmp.ne.s32.totalorder %s115, %s131
      %p133 = scmp.eq.s32.totalorder %s23, 0
      %p134 = por %p132, %p133
      %p135 = scmp.le.s32.totalorder 1, %s17
      %p136 = scmp.lt.s32.totalorder %s17, 3
      %p137 = pnand %p135, %p136
      %p138 = pneg %p137
      // Predicated region
      $region9: #{tpu_custom_call.1} parent=5 // pred_check
        _
      $region10: #{tpu_custom_call.1} parent=5 // pred_check_branch
        %140 = sbr.rel (%p137) target = $region12
      $region11: #{tpu_custom_call.1} parent=5 // pred_region
        %s141 = ssub.s32 %s17, 1
        // Predicated region
        $region13: #{tpu_custom_call.1} parent=11 // pred_check
          %p142 = pneg %p78
        $region14: #{tpu_custom_call.1} parent=11 // pred_check_branch
          %144 = sbr.rel (%p142) target = $region16
        $region15: #{tpu_custom_call.1} parent=11 // pred_region
          %s146 = ssub.s32 16, 16
          %147 = vsyncadd [#allocation6], %s146
          %s149 = sshll.u32 %s1, 4
          %s150 = int_to_ptr.vmem [resolvable:$true] %s149
          %152 = dma.vmem_to_smem %s150, 16, [#allocation7], [#allocation6]
        $region16: #{tpu_custom_call.1} parent=11 // pred_fallthru
          _
        // Predicated region
        $region17: #{tpu_custom_call.1} parent=11 // pred_check
          %p153 = pneg %p99
        $region18: #{tpu_custom_call.1} parent=11 // pred_check_branch
          %155 = sbr.rel (%p153) target = $region20
        $region19: #{tpu_custom_call.1} parent=11 // pred_region
          _
        $region20: #{tpu_custom_call.1} parent=11 // pred_fallthru
          _
      $region12: #{tpu_custom_call.1} parent=5 // pred_fallthru
        _
      %p156 = scmp.lt.s32.totalorder %s17, 2
      // Predicated region
      $region21: #{tpu_custom_call.1} parent=5 // pred_check
        %p157 = pneg %p156
      $region22: #{tpu_custom_call.1} parent=5 // pred_check_branch
        %159 = sbr.rel (%p157) target = $region24
      $region23: #{tpu_custom_call.1} parent=5 // pred_region
        // Predicated region
        $region25: #{tpu_custom_call.1} parent=23 // pred_check
          %p160 = pneg %p51
        $region26: #{tpu_custom_call.1} parent=23 // pred_check_branch
          %162 = sbr.rel (%p160) target = $region28
        $region27: #{tpu_custom_call.1} parent=23 // pred_region
          %s163 = sand.u32 %s41, 1
          %s164 = scalar_lea.sflag [#allocation4], %s163
          %s165 = sand.u32 %s41, 1
          %s166 = smul.addr %s165, 8
          %s167 = scalar_lea.vmem [#allocation3], %s166
          %s168 = smul.u32 2, %s25
          %s170 = ssub.s32 128, 128
          %171 = vsyncadd %s164, %s170
          %s172 = smul.addr %s24, 2
          %s173 = sadd.s32 %s168, %s172
          %s174 = smul.addr %s173, 64
          %s175 = scalar_lea.hbm %s0, %s174
          %s177 = sshll.u32 %s167, 4
          %s178 = int_to_ptr.vmem [resolvable:$true] %s177
          %180 = dma.hbm_to_vmem [thread:$0]  %s175, 128, %s178, %s164
        $region28: #{tpu_custom_call.1} parent=23 // pred_fallthru
          _
      $region24: #{tpu_custom_call.1} parent=5 // pred_fallthru
        _
      %p181 = scmp.le.s32.totalorder 1, %s17
      %p182 = scmp.lt.s32.totalorder %s17, 3
      %p183 = pnand %p181, %p182
      %p184 = pneg %p183
      // Predicated region
      $region29: #{tpu_custom_call.1} parent=5 // pred_check
        _
      $region30: #{tpu_custom_call.1} parent=5 // pred_check_branch
        %186 = sbr.rel (%p183) target = $region32
      $region31: #{tpu_custom_call.1} parent=5 // pred_region
        %s187 = ssub.s32 %s17, 1
        %s188 = sand.u32 %s44, 1
        %s189 = scalar_lea.sflag [#allocation4], %s188
        %s190 = sand.u32 %s44, 1
        %s191 = smul.addr %s190, 8
        %s192 = scalar_lea.vmem [#allocation3], %s191
        // Predicated region
        $region33: #{tpu_custom_call.1} parent=31 // pred_check
          %p193 = pneg %p57
        $region34: #{tpu_custom_call.1} parent=31 // pred_check_branch
          %195 = sbr.rel (%p193) target = $region36
        $region35: #{tpu_custom_call.1} parent=31 // pred_region
          %196 = dma.done %s189, 128
        $region36: #{tpu_custom_call.1} parent=31 // pred_fallthru
          _
        // Predicated region
        $region37: #{tpu_custom_call.1} parent=31 // pred_check
          %p197 = pneg %p78
        $region38: #{tpu_custom_call.1} parent=31 // pred_check_branch
          %199 = sbr.rel (%p197) target = $region40
        $region39: #{tpu_custom_call.1} parent=31 // pred_region
          %200 = dma.done [#allocation6], 16
        $region40: #{tpu_custom_call.1} parent=31 // pred_fallthru
          _
        %201 = sfence
        %s202 = sand.u32 %s44, 1
        %s203 = scalar_lea.sflag [#allocation4], %s202
        %s204 = sand.u32 %s44, 1
        %s205 = smul.addr %s204, 8
        %s206 = scalar_lea.vmem [#allocation3], %s205
        %p207 = pneg %p57
        %p208 = pneg %p54
        %p209 = pneg %p78
        %p210 = pneg %p75
        %p211 = pneg %p99
        %p212 = pneg %p96
        %p213 = pneg %p127
        %p214 = pneg %p124
        %s215 = sand.u32 %s114, 1
        %s216 = scalar_lea.sflag [#allocation5], %s215
        %s217 = sand.u32 %s114, 1
        %s218 = smul.addr %s217, 2
        %s219 = scalar_lea.vmem [#allocation8], %s218
        %s220 = smul.u32 2, %s27
        %s221 = smul.u32 2, %s27
        %v222 = vld [vmem:[%s192] sm:$0xff]
        %s223 = sld [smem:[#allocation7]]
        %v224 = vstv %s223
        %v225 = vmul.f32 %v222, %v224
        %s226 = sld [smem:[#allocation7 + $0x1]]
        %v227 = vstv %s226
        %v228 = vmul.f32 %v222, %v227
        %v230 = vrot.slane %v228, 5
        %v231 = vrot.slane %v230, 4
        %v233 = vadd.f32 %v225, %v231
        %s234 = sld [smem:[#allocation7 + $0x2]]
        %v235 = vstv %s234
        %v236 = vmul.f32 %v222, %v235
        %v238 = vrot.slane %v236, 6
        %v239 = vrot.slane %v238, 4
        %v241 = vadd.f32 %v233, %v239
        %s242 = sld [smem:[#allocation7 + $0x3]]
        %v243 = vstv %s242
        %v244 = vmul.f32 %v222, %v243
        %v246 = vrot.slane %v244, 7
        %v247 = vrot.slane %v246, 4
        %v249 = vadd.f32 %v241, %v247
        %s250 = sld [smem:[#allocation2]]
        %v251 = vstv %s250
        %v252 = vadd.f32 %v249, %v251
        %v255 = vunpack.c.l.s4 1966171168
        %v256 = vunpack.c.0.s8 %v255
        %v257 = vlaneseq
        %v258 = vshrl.u32 %v257, 7
        %v259 = vsub.s32 %v256, %v258
        %v260 = vrot.slane %v252, %v259
        %v262 = vunpack.c.l.s4 1966171168
        %v263 = vunpack.c.0.s8 %v262
        %v264 = vlaneseq
        %v265 = vshrl.u32 %v264, 7
        %v266 = vsub.s32 %v263, %v265
        %v267 = vrot.slane %v260, %v266
        %v269 = vlaneseq
        %vm270 = vcmp.ge.s32.totalorder %v269, 0
        %vm271 = vcmp.lt.s32.totalorder %v269, 256
        %vm272 = vmand %vm270, %vm271
        %273 = vst.msk [vmem:[%s219] sm:$0x3] %vm272, %v267
        %s274 = sand.u32 %s114, 1
        %s275 = scalar_lea.sflag [#allocation5], %s274
        %s276 = sand.u32 %s114, 1
        %s277 = smul.addr %s276, 2
        %s278 = scalar_lea.vmem [#allocation8], %s277
        // Predicated region
        $region41: #{tpu_custom_call.1} parent=31 // pred_check
          %p279 = pneg %p124
        $region42: #{tpu_custom_call.1} parent=31 // pred_check_branch
          %281 = sbr.rel (%p279) target = $region44
        $region43: #{tpu_custom_call.1} parent=31 // pred_region
          %s282 = smul.u32 2, %s27
          %s284 = ssub.s32 32, 32
          %285 = vsyncadd %s275, %s284
          %s286 = smul.addr %s26, 2
          %s287 = sadd.s32 %s282, %s286
          %s288 = smul.addr %s287, 16
          %s289 = scalar_lea.hbm %s3, %s288
          %s291 = sshll.u32 %s278, 4
          %s292 = int_to_ptr.vmem [resolvable:$true] %s291
          %294 = dma.vmem_to_hbm [thread:$0]  %s292, 32, %s289, %s275
        $region44: #{tpu_custom_call.1} parent=31 // pred_fallthru
          _
      $region32: #{tpu_custom_call.1} parent=5 // pred_fallthru
        _
      %p295 = scmp.le.s32.totalorder 2, %s17
      // Predicated region
      $region45: #{tpu_custom_call.1} parent=5 // pred_check
        %p296 = pneg %p295
      $region46: #{tpu_custom_call.1} parent=5 // pred_check_branch
        %298 = sbr.rel (%p296) target = $region48
      $region47: #{tpu_custom_call.1} parent=5 // pred_region
        %s299 = ssub.s32 %s17, 2
        // Predicated region
        $region49: #{tpu_custom_call.1} parent=47 // pred_check
          %p300 = pneg %p130
        $region50: #{tpu_custom_call.1} parent=47 // pred_check_branch
          %302 = sbr.rel (%p300) target = $region52
        $region51: #{tpu_custom_call.1} parent=47 // pred_region
          %s303 = sand.u32 %s115, 1
          %s304 = scalar_lea.sflag [#allocation5], %s303
          %s305 = sand.u32 %s115, 1
          %s306 = smul.addr %s305, 2
          %s307 = scalar_lea.vmem [#allocation8], %s306
          %308 = dma.done %s304, 32
        $region52: #{tpu_custom_call.1} parent=47 // pred_fallthru
          _
      $region48: #{tpu_custom_call.1} parent=5 // pred_fallthru
        _
    $region6: #{tpu_custom_call.1} parent=1 // loop_footer
      %s21 = sadd.s32 1, %s17
    $region7: #{tpu_custom_call.1} parent=1 // loop_footer_branch
      %16 = sbr.rel target = $region3
    $region8: #{tpu_custom_call.1} parent=1 // loop_exit
      _
    %309 = vsyncpa [#allocation4], 1
    %s310 = scalar_lea.sflag [#allocation4], 1
    %311 = vsyncpa %s310, 1
    %312 = vsyncpa [#allocation5], 1
    %s313 = scalar_lea.sflag [#allocation5], 1
    %314 = vsyncpa %s313, 1
    %315 = vsyncpa [#allocation6], 1
    %s316 = scalar_lea.sflag [#allocation6], 1
    %317 = vsyncpa %s316, 1

</llo_original>
